<compile_context>
chip_gen: v6e
topology: v6e:2x2x1
jax: 0.10.0
libtpu: 0.0.40
codegen_flags: <defaults>
</compile_context>

<pallas_src>
import jax
import jax.numpy as jnp
from jax.experimental import pallas as pl
from jax.experimental.pallas import tpu as pltpu


T_PAD = 128        # topic dim padded to a full lane width (50 -> 128)
NEG_INF = -1e30    # bias fill for padded topic lanes (masks them out of softmax)


# ------------------------------- kernels ---------------------------------- #

def beta_kernel(t_ref, vT_ref, beta_ref):
    """beta = softmax(t @ v.T, axis=1). Parameter-only -> hoisted out of forward."""
    logits = jnp.dot(t_ref[...], vT_ref[...], preferred_element_type=jnp.float32)
    m = jnp.max(logits, axis=1, keepdims=True)
    e = jnp.exp(logits - m)
    beta_ref[...] = e * pl.reciprocal(jnp.sum(e, axis=1, keepdims=True), approx=True)


def gsm_fwd_kernel(
    x_ref,                    # (tb, V)            f32
    w0_ref, b0_ref,           # (V, 1024) bf16, (1, 1024) f32
    w1_ref, b1_ref,           # (1024, 300) bf16, (1, 300) f32
    wml_ref, bml_ref,         # fused [mu | logvar]: (300, 2*T_PAD), (1, 2*T_PAD)
    eps_ref,                  # (tb, T_PAD) f32, zero in padded lanes
    wfc1_ref, bfc1_ref,       # (T_PAD, T_PAD), (1, T_PAD) with -inf in padded lanes
    beta_ref,                 # (T_PAD, V) f32 (padded rows are harmless: theta=0 there)
    xrec_ref,                 # (tb, V)
    mlt_ref,                  # (tb, 3*T_PAD) packed [mu | log_var | theta]
):
    tp = eps_ref.shape[-1]

    # ---- encoder (dropout p=0.0 -> identity); bf16 operands, f32 accumulation ----
    x = x_ref[...].astype(jnp.bfloat16)
    h = jnp.dot(x, w0_ref[...], preferred_element_type=jnp.float32) + b0_ref[...]
    h = jnp.maximum(h, 0.0)
    h = jnp.dot(h.astype(jnp.bfloat16), w1_ref[...],
                preferred_element_type=jnp.float32) + b1_ref[...]
    h = jnp.maximum(h, 0.0)

    # ---- fused mu / logvar projection, static lane-aligned split ----
    ml = jnp.dot(h, wml_ref[...], preferred_element_type=jnp.float32) + bml_ref[...]
    mu = ml[:, :tp]
    lv = ml[:, tp:]

    # ---- reparameterize: z = mu + eps * exp(log_var / 2) ----
    z = mu + eps_ref[...] * jnp.exp(lv * 0.5)

    # ---- fc1 + softmax over topics (padded lanes carry -inf bias -> exactly 0) ----
    t_logits = jnp.dot(z, wfc1_ref[...], preferred_element_type=jnp.float32) + bfc1_ref[...]
    t_max = jnp.max(t_logits, axis=1, keepdims=True)
    t_exp = jnp.exp(t_logits - t_max)
    theta = t_exp * pl.reciprocal(jnp.sum(t_exp, axis=1, keepdims=True), approx=True)

    # ---- decode with precomputed beta ----
    xrec_ref[...] = jnp.dot(theta, beta_ref[...], preferred_element_type=jnp.float32)

    # ---- one lane-dense packed output slab instead of three narrow outputs ----
    mlt_ref[:, 0:tp] = mu
    mlt_ref[:, tp:2 * tp] = lv
    mlt_ref[:, 2 * tp:3 * tp] = theta


# ------------------------------- wrappers ---------------------------------- #

def _pad_cols(a, cols, fill=0.0):
    return jnp.pad(a, ((0, 0), (0, cols - a.shape[1])), constant_values=fill)


def _vmem_limit(block_bytes):
    """Double-buffer headroom + slack, floored at 16 MiB, capped at a portable 64 MiB."""
    return int(min(64 * 2 ** 20, max(16 * 2 ** 20, 2 * block_bytes + 4 * 2 ** 20)))


def init_gsm_params(key, voc_size, n_topic):
    """Deterministic parameter init matching the module's shapes (synthetic values)."""
    encode_dims = [voc_size, 1024, 300, n_topic]
    ks = jax.random.split(key, 16)

    def linear(kw, kb, fan_in, fan_out):
        bound = 1.0 / jnp.sqrt(jnp.float32(fan_in))
        w = jax.random.uniform(kw, (fan_in, fan_out), jnp.float32, -bound, bound)
        b = jax.random.uniform(kb, (1, fan_out), jnp.float32, -bound, bound)
        return w, b

    def xavier(k, shape):
        bound = jnp.sqrt(6.0 / (shape[0] + shape[1]))
        return jax.random.uniform(k, shape, jnp.float32, -bound, bound)

    p = {}
    p["w0"], p["b0"] = linear(ks[0], ks[1], encode_dims[0], encode_dims[1])
    p["w1"], p["b1"] = linear(ks[2], ks[3], encode_dims[1], encode_dims[2])
    p["wmu"], p["bmu"] = linear(ks[4], ks[5], encode_dims[2], encode_dims[3])
    p["wlv"], p["blv"] = linear(ks[6], ks[7], encode_dims[2], encode_dims[3])
    p["wfc1"], p["bfc1"] = linear(ks[8], ks[9], n_topic, n_topic)
    p["t"] = xavier(ks[10], (n_topic, 300))     # t.weight
    p["v"] = xavier(ks[11], (voc_size, 300))    # v.weight
    return p


def prepare_gsm(params, t_pad=T_PAD):
    """Pad / fuse / cast parameters once, and compute beta once (parameter-only)."""
    T = params["t"].shape[0]
    V = params["v"].shape[0]

    prep = {
        "n_topic": T,
        "w0": params["w0"].astype(jnp.bfloat16),
        "b0": params["b0"],
        "w1": params["w1"].astype(jnp.bfloat16),
        "b1": params["b1"],
        "wml": jnp.concatenate(
            [_pad_cols(params["wmu"], t_pad), _pad_cols(params["wlv"], t_pad)], axis=1),
        "bml": jnp.concatenate(
            [_pad_cols(params["bmu"], t_pad), _pad_cols(params["blv"], t_pad)], axis=1),
        "wfc1": jnp.pad(params["wfc1"], ((0, t_pad - T), (0, t_pad - T))),
        "bfc1": _pad_cols(params["bfc1"], t_pad, fill=NEG_INF),
        "t": params["t"],
    }

    # beta = softmax(t @ v.T): depends only on parameters -> computed here once.
    t_p = jnp.pad(params["t"], ((0, t_pad - T), (0, 0)))
    vT = params["v"].T  # (300, V): glue transpose avoids an in-kernel XLU transpose
    vmem = pl.BlockSpec(memory_space=pltpu.MemorySpace.VMEM)
    beta_bytes = 4 * (t_p.size + vT.size + t_pad * V)
    beta_p = pl.pallas_call(
        beta_kernel,
        out_shape=jax.ShapeDtypeStruct((t_pad, V), jnp.float32),
        in_specs=[vmem, vmem],
        out_specs=vmem,
        compiler_params=pltpu.CompilerParams(vmem_limit_bytes=_vmem_limit(beta_bytes)),
    )(t_p, vT)

    prep["beta_padded"] = beta_p
    prep["beta"] = beta_p[:T]
    return prep


def gsm_forward(x, eps, prep, *, batch_tile=128):
    """Per-example forward: encoder -> reparameterize -> fc1/softmax -> decode."""
    B, V = x.shape
    T = prep["n_topic"]
    tp = T_PAD

    eps_p = _pad_cols(eps, tp)

    tb = B if B <= batch_tile else batch_tile  # 128 keeps (8,128) divisibility
    grid = (pl.cdiv(B, tb),)
    row = lambda i: (i, 0)
    rep = lambda i: (0, 0)

    in_specs = [
        pl.BlockSpec((tb, V), row),                    # x
        pl.BlockSpec(prep["w0"].shape, rep),           # w0 (bf16)
        pl.BlockSpec(prep["b0"].shape, rep),
        pl.BlockSpec(prep["w1"].shape, rep),           # w1 (bf16)
        pl.BlockSpec(prep["b1"].shape, rep),
        pl.BlockSpec(prep["wml"].shape, rep),          # fused mu|logvar weight
        pl.BlockSpec(prep["bml"].shape, rep),
        pl.BlockSpec((tb, tp), row),                   # eps (padded)
        pl.BlockSpec(prep["wfc1"].shape, rep),
        pl.BlockSpec(prep["bfc1"].shape, rep),
        pl.BlockSpec(prep["beta_padded"].shape, rep),  # precomputed beta
    ]
    out_specs = (
        pl.BlockSpec((tb, V), row),                    # x_reconst
        pl.BlockSpec((tb, 3 * tp), row),               # packed mu | log_var | theta
    )
    out_shapes = (
        jax.ShapeDtypeStruct((B, V), jnp.float32),
        jax.ShapeDtypeStruct((B, 3 * tp), jnp.float32),
    )

    block_bytes = (
        tb * V * 4 + prep["w0"].size * 2 + prep["b0"].size * 4
        + prep["w1"].size * 2 + prep["b1"].size * 4
        + prep["wml"].size * 4 + prep["bml"].size * 4
        + tb * tp * 4 + prep["wfc1"].size * 4 + prep["bfc1"].size * 4
        + prep["beta_padded"].size * 4
        + tb * V * 4 + tb * 3 * tp * 4
    )

    xrec, mlt = pl.pallas_call(
        gsm_fwd_kernel,
        out_shape=out_shapes,
        grid=grid,
        in_specs=in_specs,
        out_specs=out_specs,
        compiler_params=pltpu.CompilerParams(
            dimension_semantics=("parallel",),          # megacore sharding on v7x
            vmem_limit_bytes=_vmem_limit(block_bytes),
        ),
    )(x, prep["w0"], prep["b0"], prep["w1"], prep["b1"],
      prep["wml"], prep["bml"], eps_p, prep["wfc1"], prep["bfc1"],
      prep["beta_padded"])

    mu = mlt[:, :T]
    lv = mlt[:, tp:tp + T]
    theta = mlt[:, 2 * tp:2 * tp + T]
    # forward() also returns self.beta and self.t.weight
    return xrec, mu, lv, theta, prep["beta"], prep["t"]


def gsm_reference(x, eps, params):
    """Pure-JAX reference mirroring the kernel's bf16 encoder precision."""
    h = jnp.dot(x.astype(jnp.bfloat16), params["w0"].astype(jnp.bfloat16),
                preferred_element_type=jnp.float32) + params["b0"]
    h = jnp.maximum(h, 0.0)
    h = jnp.dot(h.astype(jnp.bfloat16), params["w1"].astype(jnp.bfloat16),
                preferred_element_type=jnp.float32) + params["b1"]
    h = jnp.maximum(h, 0.0)
    mu = h @ params["wmu"] + params["bmu"]
    lv = h @ params["wlv"] + params["blv"]
    z = mu + eps * jnp.exp(lv / 2.0)
    theta = jax.nn.softmax(z @ params["wfc1"] + params["bfc1"], axis=1)
    beta = jax.nn.softmax(params["t"] @ params["v"].T, axis=1)
    xrec = theta @ beta
    return xrec, mu, lv, theta, beta, params["t"]


if __name__ == "__main__":
    B, V, T = 8, 256, 50  # batch, voc_size, n_topic (hidden dims 1024/300 fixed by module)

    key = jax.random.PRNGKey(0)
    k_params, k_x, k_eps = jax.random.split(key, 3)

    params = init_gsm_params(k_params, voc_size=V, n_topic=T)
    # bag-of-words-like non-negative input
    x = jax.random.uniform(k_x, (B, V), jnp.float32, 0.0, 5.0)
    # torch.randn_like(std) -> pre-drawn standard normal noise (deterministic here)
    eps = jax.random.normal(k_eps, (B, T), jnp.float32)

    prep = prepare_gsm(params)            # includes the hoisted beta pallas_call
    outs = gsm_forward(x, eps, prep)
    outs = jax.block_until_ready(outs)

    refs = gsm_reference(x, eps, params)
    names = ("x_reconst", "mu", "log_var", "theta", "beta", "t_weight")
    for name, o, r in zip(names, outs, refs):
        assert o.shape == r.shape, f"{name}: shape {o.shape} vs {r.shape}"
        assert jnp.allclose(o, r, atol=5e-3, rtol=5e-3), f"{name}: mismatch vs reference"

    # distribution sanity: theta rows and beta rows are probability simplexes
    assert jnp.allclose(jnp.sum(outs[3], axis=1), 1.0, atol=2e-2)
    assert jnp.allclose(jnp.sum(outs[4], axis=1), 1.0, atol=2e-2)

    print("KERNEL_OK")
</pallas_src>

<mosaic_0001>
module attributes {stable_mosaic.version = 11 : i64} {
  func.func @beta_kernel(%arg0: memref<128x300xf32, #tpu.memory_space<vmem>>, %arg1: memref<300x256xf32, #tpu.memory_space<vmem>>, %arg2: memref<128x256xf32, #tpu.memory_space<vmem>>) attributes {dimension_semantics = [], scalar_prefetch = 0 : i64, scratch_operands = 0 : i64, tpu.core_type = #tpu.core_type<tc>} {
    %c0 = arith.constant 0 : index
    %c0_0 = arith.constant 0 : index
    %0 = vector.load %arg0[%c0, %c0_0] : memref<128x300xf32, #tpu.memory_space<vmem>>, vector<128x300xf32>
    %c0_1 = arith.constant 0 : index
    %c0_2 = arith.constant 0 : index
    %1 = vector.load %arg1[%c0_1, %c0_2] : memref<300x256xf32, #tpu.memory_space<vmem>>, vector<300x256xf32>
    %cst = arith.constant dense<0.000000e+00> : vector<128x256xf32>
    %2 = tpu.matmul %0, %1, %cst {dimension_numbers = #tpu.dot_dimension_numbers<[1], [0], [0], [1], [0, 0, 1, 1], [], []>} : vector<128x300xf32>, vector<300x256xf32>, vector<128x256xf32> -> vector<128x256xf32>
    %cst_3 = arith.constant dense<0xFF800000> : vector<128xf32>
    %3 = vector.multi_reduction <maximumf>, %2, %cst_3 [1] : vector<128x256xf32> to vector<128xf32>
    %4 = vector.shape_cast %3 : vector<128xf32> to vector<128x1xf32>
    %5 = vector.broadcast %4 : vector<128x1xf32> to vector<128x256xf32>
    %6 = arith.subf %2, %5 : vector<128x256xf32>
    %7 = math.exp %6 : vector<128x256xf32>
    %cst_4 = arith.constant dense<0.000000e+00> : vector<128xf32>
    %8 = vector.multi_reduction <add>, %7, %cst_4 [1] : vector<128x256xf32> to vector<128xf32>
    %9 = vector.shape_cast %8 : vector<128xf32> to vector<128x1xf32>
    %10 = tpu.reciprocal %9 {approx = true} : vector<128x1xf32> -> vector<128x1xf32>
    %11 = vector.broadcast %10 : vector<128x1xf32> to vector<128x256xf32>
    %12 = arith.mulf %7, %11 : vector<128x256xf32>
    %c0_5 = arith.constant 0 : index
    %c0_6 = arith.constant 0 : index
    %13 = vector.load %arg2[%c0_5, %c0_6] : memref<128x256xf32, #tpu.memory_space<vmem>>, vector<128x256xf32>
    tpu.vector_store %arg2[%c0_5, %c0_6], %12 {strides = array<i32>} : memref<128x256xf32, #tpu.memory_space<vmem>>, vector<128x256xf32>,
    return
  }
}

</mosaic_0001>

<llo_original>
// kernel: tpu_custom_call.1
$region0: #{tpu_custom_call.1}
  #allocation0 [shape = 'u32[]', space=smem, size = 0x4, offset = 0x4, fixed_abs, tag = 'smem constant byte address 0x4 - core index']
  #allocation1 [shape = 'u32[144,128]{1,0:T(1,128)}', space=vmem, size = 0x12000, scoped, tag = 'internal scratch']
  %s0 = inlined_call_operand.vmem [shape: f32[128,300], index: 0, kind: input, shape index: {}]
  %s1 = inlined_call_operand.vmem [shape: f32[300,256], index: 1, kind: input, shape index: {}]
  %s2 = inlined_call_operand.hbm [shape: f32[128,256], index: 2, kind: output, shape index: {}]
  %s3 = sld [smem:[#allocation0]]
  $region18: #{tpu_custom_call.1} parent=0
    _
  %s5 = ssub.s32 1, %s3
  %s6 = scalar_select 0, %s5, %s3
  $region1: #{tpu_custom_call.1} parent=0
    #allocation2 [shape = 'u8[131072]{0}', space=vmem, size = 0x20000, scoped, tag = 'output window, operand 0, single buffered']
    #allocation3 [shape = 's32[1]{0}', space=sflag, size = 0x4, scoped, tag = 'scoped memory for tpu_custom_call.1']
    %7 = vsyncpa [#allocation3], 0
    // Predicated region
    $region2: #{tpu_custom_call.1} parent=1 // pred_check
      _
    $region3: #{tpu_custom_call.1} parent=1 // pred_check_branch
      %9 = sbr.rel (0) target = $region5
    $region4: #{tpu_custom_call.1} parent=1 // pred_region
      _
    $region5: #{tpu_custom_call.1} parent=1 // pred_fallthru
      _
    // Predicated region
    $region6: #{tpu_custom_call.1} parent=1 // pred_check
      _
    $region7: #{tpu_custom_call.1} parent=1 // pred_check_branch
      %11 = sbr.rel (0) target = $region9
    $region8: #{tpu_custom_call.1} parent=1 // pred_region
      _
    $region9: #{tpu_custom_call.1} parent=1 // pred_fallthru
      _
    %v12 = vld [vmem:[%s0] sm:$0xff]
    %v13 = vld [vmem:[%s0 + $0x8] sm:$0xff]
    %v14 = vld [vmem:[%s0 + $0x10] sm:$0xff]
    %v15 = vld [vmem:[%s0 + $0x18] sm:$0xff]
    %v16 = vld [vmem:[%s0 + $0x20] sm:$0xff]
    %v17 = vld [vmem:[%s0 + $0x28] sm:$0xff]
    %v18 = vld [vmem:[%s0 + $0x30] sm:$0xff]
    %v19 = vld [vmem:[%s0 + $0x38] sm:$0xff]
    %v20 = vld [vmem:[%s0 + $0x40] sm:$0xff]
    %v21 = vld [vmem:[%s0 + $0x48] sm:$0xff]
    %v22 = vld [vmem:[%s0 + $0x50] sm:$0xff]
    %v23 = vld [vmem:[%s0 + $0x58] sm:$0xff]
    %v24 = vld [vmem:[%s0 + $0x60] sm:$0xff]
    %v25 = vld [vmem:[%s0 + $0x68] sm:$0xff]
    %v26 = vld [vmem:[%s0 + $0x70] sm:$0xff]
    %v27 = vld [vmem:[%s0 + $0x78] sm:$0xff]
    %v28 = vld [vmem:[%s0 + $0x80] sm:$0xff]
    %v29 = vld [vmem:[%s0 + $0x88] sm:$0xff]
    %v30 = vld [vmem:[%s0 + $0x90] sm:$0xff]
    %v31 = vld [vmem:[%s0 + $0x98] sm:$0xff]
    %v32 = vld [vmem:[%s0 + $0xa0] sm:$0xff]
    %v33 = vld [vmem:[%s0 + $0xa8] sm:$0xff]
    %v34 = vld [vmem:[%s0 + $0xb0] sm:$0xff]
    %v35 = vld [vmem:[%s0 + $0xb8] sm:$0xff]
    %v36 = vld [vmem:[%s0 + $0xc0] sm:$0xff]
    %v37 = vld [vmem:[%s0 + $0xc8] sm:$0xff]
    %v38 = vld [vmem:[%s0 + $0xd0] sm:$0xff]
    %v39 = vld [vmem:[%s0 + $0xd8] sm:$0xff]
    %v40 = vld [vmem:[%s0 + $0xe0] sm:$0xff]
    %v41 = vld [vmem:[%s0 + $0xe8] sm:$0xff]
    %v42 = vld [vmem:[%s0 + $0xf0] sm:$0xff]
    %v43 = vld [vmem:[%s0 + $0xf8] sm:$0xff]
    %v44 = vld [vmem:[%s0 + $0x100] sm:$0xff]
    %v45 = vld [vmem:[%s0 + $0x108] sm:$0xff]
    %v46 = vld [vmem:[%s0 + $0x110] sm:$0xff]
    %v47 = vld [vmem:[%s0 + $0x118] sm:$0xff]
    %v48 = vld [vmem:[%s0 + $0x120] sm:$0xff]
    %v49 = vld [vmem:[%s0 + $0x128] sm:$0xff]
    %v50 = vld [vmem:[%s0 + $0x130] sm:$0xff]
    %v51 = vld [vmem:[%s0 + $0x138] sm:$0xff]
    %v52 = vld [vmem:[%s0 + $0x140] sm:$0xff]
    %v53 = vld [vmem:[%s0 + $0x148] sm:$0xff]
    %v54 = vld [vmem:[%s0 + $0x150] sm:$0xff]
    %v55 = vld [vmem:[%s0 + $0x158] sm:$0xff]
    %v56 = vld [vmem:[%s0 + $0x160] sm:$0xff]
    %v57 = vld [vmem:[%s0 + $0x168] sm:$0xff]
    %v58 = vld [vmem:[%s0 + $0x170] sm:$0xff]
    %v59 = vld [vmem:[%s0 + $0x178] sm:$0xff]
    %v60 = vld [vmem:[%s1] sm:$0xff]
    %v61 = vld [vmem:[%s1 + $0x8] sm:$0xff]
    %v62 = vld [vmem:[%s1 + $0x10] sm:$0xff]
    %v63 = vld [vmem:[%s1 + $0x18] sm:$0xff]
    %v64 = vld [vmem:[%s1 + $0x20] sm:$0xff]
    %v65 = vld [vmem:[%s1 + $0x28] sm:$0xff]
    %v66 = vld [vmem:[%s1 + $0x30] sm:$0xff]
    %v67 = vld [vmem:[%s1 + $0x38] sm:$0xff]
    %v68 = vld [vmem:[%s1 + $0x40] sm:$0xff]
    %v69 = vld [vmem:[%s1 + $0x48] sm:$0xff]
    %v70 = vld [vmem:[%s1 + $0x50] sm:$0xff]
    %v71 = vld [vmem:[%s1 + $0x58] sm:$0xff]
    %v72 = vld [vmem:[%s1 + $0x60] sm:$0xff]
    %v73 = vld [vmem:[%s1 + $0x68] sm:$0xff]
    %v74 = vld [vmem:[%s1 + $0x70] sm:$0xff]
    %v75 = vld [vmem:[%s1 + $0x78] sm:$0xff]
    %v76 = vld [vmem:[%s1 + $0x80] sm:$0xff]
    %v77 = vld [vmem:[%s1 + $0x88] sm:$0xff]
    %v78 = vld [vmem:[%s1 + $0x90] sm:$0xff]
    %v79 = vld [vmem:[%s1 + $0x98] sm:$0xff]
    %v80 = vld [vmem:[%s1 + $0xa0] sm:$0xff]
    %v81 = vld [vmem:[%s1 + $0xa8] sm:$0xff]
    %v82 = vld [vmem:[%s1 + $0xb0] sm:$0xff]
    %v83 = vld [vmem:[%s1 + $0xb8] sm:$0xff]
    %v84 = vld [vmem:[%s1 + $0xc0] sm:$0xff]
    %v85 = vld [vmem:[%s1 + $0xc8] sm:$0xff]
    %v86 = vld [vmem:[%s1 + $0xd0] sm:$0xff]
    %v87 = vld [vmem:[%s1 + $0xd8] sm:$0xff]
    %v88 = vld [vmem:[%s1 + $0xe0] sm:$0xff]
    %v89 = vld [vmem:[%s1 + $0xe8] sm:$0xff]
    %v90 = vld [vmem:[%s1 + $0xf0] sm:$0xff]
    %v91 = vld [vmem:[%s1 + $0xf8] sm:$0xff]
    %v92 = vld [vmem:[%s1 + $0x100] sm:$0xff]
    %v93 = vld [vmem:[%s1 + $0x108] sm:$0xff]
    %v94 = vld [vmem:[%s1 + $0x110] sm:$0xff]
    %v95 = vld [vmem:[%s1 + $0x118] sm:$0xff]
    %v96 = vld [vmem:[%s1 + $0x120] sm:$0xff]
    %v97 = vld [vmem:[%s1 + $0x128] sm:$0xff]
    %v98 = vld [vmem:[%s1 + $0x130] sm:$0xff]
    %v99 = vld [vmem:[%s1 + $0x138] sm:$0xff]
    %v100 = vld [vmem:[%s1 + $0x140] sm:$0xff]
    %v101 = vld [vmem:[%s1 + $0x148] sm:$0xff]
    %v102 = vld [vmem:[%s1 + $0x150] sm:$0xff]
    %v103 = vld [vmem:[%s1 + $0x158] sm:$0xff]
    %v104 = vld [vmem:[%s1 + $0x160] sm:$0xff]
    %v105 = vld [vmem:[%s1 + $0x168] sm:$0xff]
    %v106 = vld [vmem:[%s1 + $0x170] sm:$0xff]
    %v107 = vld [vmem:[%s1 + $0x178] sm:$0xff]
    %v108 = vld [vmem:[%s1 + $0x180] sm:$0xff]
    %v109 = vld [vmem:[%s1 + $0x188] sm:$0xff]
    %v110 = vld [vmem:[%s1 + $0x190] sm:$0xff]
    %v111 = vld [vmem:[%s1 + $0x198] sm:$0xff]
    %v112 = vld [vmem:[%s1 + $0x1a0] sm:$0xff]
    %v113 = vld [vmem:[%s1 + $0x1a8] sm:$0xff]
    %v114 = vld [vmem:[%s1 + $0x1b0] sm:$0xff]
    %v115 = vld [vmem:[%s1 + $0x1b8] sm:$0xff]
    %v116 = vld [vmem:[%s1 + $0x1c0] sm:$0xff]
    %v117 = vld [vmem:[%s1 + $0x1c8] sm:$0xff]
    %v118 = vld [vmem:[%s1 + $0x1d0] sm:$0xff]
    %v119 = vld [vmem:[%s1 + $0x1d8] sm:$0xff]
    %v120 = vld [vmem:[%s1 + $0x1e0] sm:$0xff]
    %v121 = vld [vmem:[%s1 + $0x1e8] sm:$0xff]
    %v122 = vld [vmem:[%s1 + $0x1f0] sm:$0xff]
    %v123 = vld [vmem:[%s1 + $0x1f8] sm:$0xff]
    %v124 = vld [vmem:[%s1 + $0x200] sm:$0xff]
    %v125 = vld [vmem:[%s1 + $0x208] sm:$0xff]
    %v126 = vld [vmem:[%s1 + $0x210] sm:$0xff]
    %v127 = vld [vmem:[%s1 + $0x218] sm:$0xff]
    %v128 = vld [vmem:[%s1 + $0x220] sm:$0xff]
    %v129 = vld [vmem:[%s1 + $0x228] sm:$0xff]
    %v130 = vld [vmem:[%s1 + $0x230] sm:$0xff]
    %v131 = vld [vmem:[%s1 + $0x238] sm:$0xff]
    %v132 = vld [vmem:[%s1 + $0x240] sm:$0xff]
    %v133 = vld [vmem:[%s1 + $0x248] sm:$0xff]
    %v134 = vld [vmem:[%s1 + $0x250] sm:$0xf]
    %v135 = vld [vmem:[%s1 + $0x258] sm:$0xf]
    %vm136 = vcmask 359424
    %v138 = vsel %vm136, %v14, 0
    %v141 = vsel %vm136, %v17, 0
    %v144 = vsel %vm136, %v20, 0
    %v147 = vsel %vm136, %v23, 0
    %v150 = vsel %vm136, %v26, 0
    %v153 = vsel %vm136, %v29, 0
    %v156 = vsel %vm136, %v32, 0
    %v159 = vsel %vm136, %v35, 0
    %v162 = vsel %vm136, %v38, 0
    %v165 = vsel %vm136, %v41, 0
    %v168 = vsel %vm136, %v44, 0
    %v171 = vsel %vm136, %v47, 0
    %v174 = vsel %vm136, %v50, 0
    %v177 = vsel %vm136, %v53, 0
    %v180 = vsel %vm136, %v56, 0
    %v183 = vsel %vm136, %v59, 0
    %vm185 = vcmask 1043456
    %v187 = vsel %vm185, %v134, 0
    %v190 = vsel %vm185, %v135, 0
    %192 = vmatprep.subr.mxu0 %v91
    %193 = vmatpush1.msra.mxu0 %v90
    %194 = vmatprep.subr.mxu0 %v89
    %195 = vmatpush1.msra.mxu0 %v88
    %196 = vmatprep.subr.mxu0 %v87
    %197 = vmatpush1.msra.mxu0 %v86
    %198 = vmatprep.subr.mxu0 %v85
    %199 = vmatpush1.msra.mxu0 %v84
    %200 = vmatprep.subr.mxu0 %v83
    %201 = vmatpush1.msra.mxu0 %v82
    %202 = vmatprep.subr.mxu0 %v81
    %203 = vmatpush1.msra.mxu0 %v80
    %204 = vmatprep.subr.mxu0 %v79
    %205 = vmatpush1.msra.mxu0 %v78
    %206 = vmatprep.subr.mxu0 %v77
    %207 = vmatpush1.msra.mxu0 %v76
    %208 = vmatprep.subr.mxu0 %v75
    %209 = vmatpush1.msra.mxu0 %v74
    %210 = vmatprep.subr.mxu0 %v73
    %211 = vmatpush1.msra.mxu0 %v72
    %212 = vmatprep.subr.mxu0 %v71
    %213 = vmatpush1.msra.mxu0 %v70
    %214 = vmatprep.subr.mxu0 %v69
    %215 = vmatpush1.msra.mxu0 %v68
    %216 = vmatprep.subr.mxu0 %v67
    %217 = vmatpush1.msra.mxu0 %v66
    %218 = vmatprep.subr.mxu0 %v65
    %219 = vmatpush1.msra.mxu0 %v64
    %220 = vmatprep.subr.mxu0 %v63
    %221 = vmatpush1.msra.mxu0 %v62
    %222 = vmatprep.subr.mxu0 %v61
    %223 = vmatpush1.msra.mxu0 %v60
    %224 = vmatprep.subr.mxu0 %v123
    %225 = vmatpush2.msra.mxu0 %v122
    %226 = vmatprep.subr.mxu0 %v121
    %227 = vmatpush2.msra.mxu0 %v120
    %228 = vmatprep.subr.mxu0 %v119
    %229 = vmatpush2.msra.mxu0 %v118
    %230 = vmatprep.subr.mxu0 %v117
    %231 = vmatpush2.msra.mxu0 %v116
    %232 = vmatprep.subr.mxu0 %v115
    %233 = vmatpush2.msra.mxu0 %v114
    %234 = vmatprep.subr.mxu0 %v113
    %235 = vmatpush2.msra.mxu0 %v112
    %236 = vmatprep.subr.mxu0 %v111
    %237 = vmatpush2.msra.mxu0 %v110
    %238 = vmatprep.subr.mxu0 %v109
    %239 = vmatpush2.msra.mxu0 %v108
    %240 = vmatprep.subr.mxu0 %v107
    %241 = vmatpush2.msra.mxu0 %v106
    %242 = vmatprep.subr.mxu0 %v105
    %243 = vmatpush2.msra.mxu0 %v104
    %244 = vmatprep.subr.mxu0 %v103
    %245 = vmatpush2.msra.mxu0 %v102
    %246 = vmatprep.subr.mxu0 %v101
    %247 = vmatpush2.msra.mxu0 %v100
    %248 = vmatprep.subr.mxu0 %v99
    %249 = vmatpush2.msra.mxu0 %v98
    %250 = vmatprep.subr.mxu0 %v97
    %251 = vmatpush2.msra.mxu0 %v96
    %252 = vmatprep.subr.mxu0 %v95
    %253 = vmatpush2.msra.mxu0 %v94
    %254 = vmatprep.subr.mxu0 %v93
    %255 = vmatpush2.msra.mxu0 %v92
    %256 = vmatprep.mubr.f32.mxu0 %v13
    %257 = vmatmul.mubr.f32.gmra.mxu0 %v12
    %v258 = vpop.f32.mrf.mxu0
    %v259 = vadd.f32 0.0, %v258
    %v260 = vpop.f32.mrf.mxu0
    %v261 = vadd.f32 0.0, %v260
    %262 = vmatprep.mubr.f32.mxu0 %v16
    %263 = vmatmul.mubr.f32.gmra.mxu0 %v15
    %v264 = vpop.f32.mrf.mxu0
    %v265 = vadd.f32 0.0, %v264
    %v266 = vpop.f32.mrf.mxu0
    %v267 = vadd.f32 0.0, %v266
    %268 = vmatprep.mubr.f32.mxu0 %v19
    %269 = vmatmul.mubr.f32.gmra.mxu0 %v18
    %v270 = vpop.f32.mrf.mxu0
    %v271 = vadd.f32 0.0, %v270
    %v272 = vpop.f32.mrf.mxu0
    %v273 = vadd.f32 0.0, %v272
    %274 = vmatprep.mubr.f32.mxu0 %v22
    %275 = vmatmul.mubr.f32.gmra.mxu0 %v21
    %v276 = vpop.f32.mrf.mxu0
    %v277 = vadd.f32 0.0, %v276
    %v278 = vpop.f32.mrf.mxu0
    %v279 = vadd.f32 0.0, %v278
    %280 = vmatprep.mubr.f32.mxu0 %v25
    %281 = vmatmul.mubr.f32.gmra.mxu0 %v24
    %v282 = vpop.f32.mrf.mxu0
    %v283 = vadd.f32 0.0, %v282
    %v284 = vpop.f32.mrf.mxu0
    %v285 = vadd.f32 0.0, %v284
    %286 = vmatprep.mubr.f32.mxu0 %v28
    %287 = vmatmul.mubr.f32.gmra.mxu0 %v27
    %v288 = vpop.f32.mrf.mxu0
    %v289 = vadd.f32 0.0, %v288
    %v290 = vpop.f32.mrf.mxu0
    %v291 = vadd.f32 0.0, %v290
    %292 = vmatprep.mubr.f32.mxu0 %v31
    %293 = vmatmul.mubr.f32.gmra.mxu0 %v30
    %v294 = vpop.f32.mrf.mxu0
    %v295 = vadd.f32 0.0, %v294
    %v296 = vpop.f32.mrf.mxu0
    %v297 = vadd.f32 0.0, %v296
    %298 = vmatprep.mubr.f32.mxu0 %v34
    %299 = vmatmul.mubr.f32.gmra.mxu0 %v33
    %v300 = vpop.f32.mrf.mxu0
    %v301 = vadd.f32 0.0, %v300
    %v302 = vpop.f32.mrf.mxu0
    %v303 = vadd.f32 0.0, %v302
    %304 = vmatprep.mubr.f32.mxu0 %v37
    %305 = vmatmul.mubr.f32.gmra.mxu0 %v36
    %v306 = vpop.f32.mrf.mxu0
    %v307 = vadd.f32 0.0, %v306
    %v308 = vpop.f32.mrf.mxu0
    %v309 = vadd.f32 0.0, %v308
    %310 = vmatprep.mubr.f32.mxu0 %v40
    %311 = vmatmul.mubr.f32.gmra.mxu0 %v39
    %v312 = vpop.f32.mrf.mxu0
    %v313 = vadd.f32 0.0, %v312
    %v314 = vpop.f32.mrf.mxu0
    %v315 = vadd.f32 0.0, %v314
    %316 = vmatprep.mubr.f32.mxu0 %v43
    %317 = vmatmul.mubr.f32.gmra.mxu0 %v42
    %v318 = vpop.f32.mrf.mxu0
    %v319 = vadd.f32 0.0, %v318
    %v320 = vpop.f32.mrf.mxu0
    %v321 = vadd.f32 0.0, %v320
    %322 = vmatprep.mubr.f32.mxu0 %v46
    %323 = vmatmul.mubr.f32.gmra.mxu0 %v45
    %v324 = vpop.f32.mrf.mxu0
    %v325 = vadd.f32 0.0, %v324
    %v326 = vpop.f32.mrf.mxu0
    %v327 = vadd.f32 0.0, %v326
    %328 = vmatprep.mubr.f32.mxu0 %v49
    %329 = vmatmul.mubr.f32.gmra.mxu0 %v48
    %v330 = vpop.f32.mrf.mxu0
    %v331 = vadd.f32 0.0, %v330
    %v332 = vpop.f32.mrf.mxu0
    %v333 = vadd.f32 0.0, %v332
    %334 = vmatprep.mubr.f32.mxu0 %v52
    %335 = vmatmul.mubr.f32.gmra.mxu0 %v51
    %v336 = vpop.f32.mrf.mxu0
    %v337 = vadd.f32 0.0, %v336
    %v338 = vpop.f32.mrf.mxu0
    %v339 = vadd.f32 0.0, %v338
    %340 = vmatprep.mubr.f32.mxu0 %v55
    %341 = vmatmul.mubr.f32.gmra.mxu0 %v54
    %v342 = vpop.f32.mrf.mxu0
    %v343 = vadd.f32 0.0, %v342
    %v344 = vpop.f32.mrf.mxu0
    %v345 = vadd.f32 0.0, %v344
    %346 = vmatprep.mubr.f32.mxu0 %v58
    %347 = vmatmul.mubr.f32.gmra.mxu0 %v57
    %v348 = vpop.f32.mrf.mxu0
    %v349 = vadd.f32 0.0, %v348
    %v350 = vpop.f32.mrf.mxu0
    %v351 = vadd.f32 0.0, %v350
    %352 = vdwg.mxu0
    %353 = vmatprep.subr.mxu0 0.0
    %354 = vmatpush1.msra.mxu0 0.0
    %355 = vmatprep.subr.mxu0 0.0
    %356 = vmatpush1.msra.mxu0 0.0
    %357 = vmatprep.subr.mxu0 0.0
    %358 = vmatpush1.msra.mxu0 0.0
    %359 = vmatprep.subr.mxu0 0.0
    %360 = vmatpush1.msra.mxu0 0.0
    %361 = vmatprep.subr.mxu0 0.0
    %362 = vmatpush1.msra.mxu0 0.0
    %363 = vmatprep.subr.mxu0 0.0
    %364 = vmatpush1.msra.mxu0 0.0
    %365 = vmatprep.subr.mxu0 0.0
    %366 = vmatpush1.msra.mxu0 0.0
    %367 = vmatprep.subr.mxu0 0.0
    %368 = vmatpush1.msra.mxu0 0.0
    %369 = vmatprep.subr.mxu0 0.0
    %370 = vmatpush1.msra.mxu0 0.0
    %371 = vmatprep.subr.mxu0 0.0
    %372 = vmatpush1.msra.mxu0 0.0
    %373 = vmatprep.subr.mxu0 %v190
    %374 = vmatpush1.msra.mxu0 %v187
    %375 = vmatprep.subr.mxu0 %v133
    %376 = vmatpush1.msra.mxu0 %v132
    %377 = vmatprep.subr.mxu0 %v131
    %378 = vmatpush1.msra.mxu0 %v130
    %379 = vmatprep.subr.mxu0 %v129
    %380 = vmatpush1.msra.mxu0 %v128
    %381 = vmatprep.subr.mxu0 %v127
    %382 = vmatpush1.msra.mxu0 %v126
    %383 = vmatprep.subr.mxu0 %v125
    %384 = vmatpush1.msra.mxu0 %v124
    %385 = vmatprep.subr.mxu0 0.0
    %386 = vmatpush2.msra.mxu0 0.0
    %387 = vmatprep.subr.mxu0 0.0
    %388 = vmatpush2.msra.mxu0 0.0
    %389 = vmatprep.subr.mxu0 0.0
    %390 = vmatpush2.msra.mxu0 0.0
    %391 = vmatprep.subr.mxu0 0.0
    %392 = vmatpush2.msra.mxu0 0.0
    %393 = vmatprep.subr.mxu0 0.0
    %394 = vmatpush2.msra.mxu0 0.0
    %395 = vmatprep.subr.mxu0 0.0
    %396 = vmatpush2.msra.mxu0 0.0
    %397 = vmatprep.subr.mxu0 0.0
    %398 = vmatpush2.msra.mxu0 0.0
    %399 = vmatprep.subr.mxu0 0.0
    %400 = vmatpush2.msra.mxu0 0.0
    %401 = vmatprep.subr.mxu0 0.0
    %402 = vmatpush2.msra.mxu0 0.0
    %403 = vmatprep.subr.mxu0 0.0
    %404 = vmatpush2.msra.mxu0 0.0
    %405 = vmatprep.subr.mxu0 0.0
    %406 = vmatpush2.msra.mxu0 0.0
    %407 = vmatprep.subr.mxu0 0.0
    %408 = vmatpush2.msra.mxu0 0.0
    %409 = vmatprep.subr.mxu0 0.0
    %410 = vmatpush2.msra.mxu0 0.0
    %411 = vmatprep.subr.mxu0 0.0
    %412 = vmatpush2.msra.mxu0 0.0
    %413 = vmatprep.subr.mxu0 0.0
    %414 = vmatpush2.msra.mxu0 0.0
    %415 = vmatprep.subr.mxu0 0.0
    %416 = vmatpush2.msra.mxu0 0.0
    %417 = vmatprep.mubr.f32.mxu0 0.0
    %418 = vmatmul.mubr.f32.gmra.mxu0 %v138
    %v419 = vpop.f32.mrf.mxu0
    %v420 = vadd.f32 %v259, %v419
    %v421 = vpop.f32.mrf.mxu0
    %v422 = vadd.f32 %v261, %v421
    %423 = vmatprep.mubr.f32.mxu0 0.0
    %424 = vmatmul.mubr.f32.gmra.mxu0 %v141
    %v425 = vpop.f32.mrf.mxu0
    %v426 = vadd.f32 %v265, %v425
    %v427 = vpop.f32.mrf.mxu0
    %v428 = vadd.f32 %v267, %v427
    %429 = vmatprep.mubr.f32.mxu0 0.0
    %430 = vmatmul.mubr.f32.gmra.mxu0 %v144
    %v431 = vpop.f32.mrf.mxu0
    %v432 = vadd.f32 %v271, %v431
    %v433 = vpop.f32.mrf.mxu0
    %v434 = vadd.f32 %v273, %v433
    %435 = vmatprep.mubr.f32.mxu0 0.0
    %436 = vmatmul.mubr.f32.gmra.mxu0 %v147
    %v437 = vpop.f32.mrf.mxu0
    %v438 = vadd.f32 %v277, %v437
    %v439 = vpop.f32.mrf.mxu0
    %v440 = vadd.f32 %v279, %v439
    %441 = vmatprep.mubr.f32.mxu0 0.0
    %442 = vmatmul.mubr.f32.gmra.mxu0 %v150
    %v443 = vpop.f32.mrf.mxu0
    %v444 = vadd.f32 %v283, %v443
    %v445 = vpop.f32.mrf.mxu0
    %v446 = vadd.f32 %v285, %v445
    %447 = vmatprep.mubr.f32.mxu0 0.0
    %448 = vmatmul.mubr.f32.gmra.mxu0 %v153
    %v449 = vpop.f32.mrf.mxu0
    %v450 = vadd.f32 %v289, %v449
    %v451 = vpop.f32.mrf.mxu0
    %v452 = vadd.f32 %v291, %v451
    %453 = vmatprep.mubr.f32.mxu0 0.0
    %454 = vmatmul.mubr.f32.gmra.mxu0 %v156
    %v455 = vpop.f32.mrf.mxu0
    %v456 = vadd.f32 %v295, %v455
    %v457 = vpop.f32.mrf.mxu0
    %v458 = vadd.f32 %v297, %v457
    %459 = vmatprep.mubr.f32.mxu0 0.0
    %460 = vmatmul.mubr.f32.gmra.mxu0 %v159
    %v461 = vpop.f32.mrf.mxu0
    %v462 = vadd.f32 %v301, %v461
    %v463 = vpop.f32.mrf.mxu0
    %v464 = vadd.f32 %v303, %v463
    %465 = vmatprep.mubr.f32.mxu0 0.0
    %466 = vmatmul.mubr.f32.gmra.mxu0 %v162
    %v467 = vpop.f32.mrf.mxu0
    %v468 = vadd.f32 %v307, %v467
    %v469 = vpop.f32.mrf.mxu0
    %v470 = vadd.f32 %v309, %v469
    %471 = vmatprep.mubr.f32.mxu0 0.0
    %472 = vmatmul.mubr.f32.gmra.mxu0 %v165
    %v473 = vpop.f32.mrf.mxu0
    %v474 = vadd.f32 %v313, %v473
    %v475 = vpop.f32.mrf.mxu0
    %v476 = vadd.f32 %v315, %v475
    %477 = vmatprep.mubr.f32.mxu0 0.0
    %478 = vmatmul.mubr.f32.gmra.mxu0 %v168
    %v479 = vpop.f32.mrf.mxu0
    %v480 = vadd.f32 %v319, %v479
    %v481 = vpop.f32.mrf.mxu0
    %v482 = vadd.f32 %v321, %v481
    %483 = vmatprep.mubr.f32.mxu0 0.0
    %484 = vmatmul.mubr.f32.gmra.mxu0 %v171
    %v485 = vpop.f32.mrf.mxu0
    %v486 = vadd.f32 %v325, %v485
    %v487 = vpop.f32.mrf.mxu0
    %v488 = vadd.f32 %v327, %v487
    %489 = vmatprep.mubr.f32.mxu0 0.0
    %490 = vmatmul.mubr.f32.gmra.mxu0 %v174
    %v491 = vpop.f32.mrf.mxu0
    %v492 = vadd.f32 %v331, %v491
    %v493 = vpop.f32.mrf.mxu0
    %v494 = vadd.f32 %v333, %v493
    %495 = vmatprep.mubr.f32.mxu0 0.0
    %496 = vmatmul.mubr.f32.gmra.mxu0 %v177
    %v497 = vpop.f32.mrf.mxu0
    %v498 = vadd.f32 %v337, %v497
    %v499 = vpop.f32.mrf.mxu0
    %v500 = vadd.f32 %v339, %v499
    %501 = vmatprep.mubr.f32.mxu0 0.0
    %502 = vmatmul.mubr.f32.gmra.mxu0 %v180
    %v503 = vpop.f32.mrf.mxu0
    %v504 = vadd.f32 %v343, %v503
    %v505 = vpop.f32.mrf.mxu0
    %v506 = vadd.f32 %v345, %v505
    %507 = vmatprep.mubr.f32.mxu0 0.0
    %508 = vmatmul.mubr.f32.gmra.mxu0 %v183
    %v509 = vpop.f32.mrf.mxu0
    %v510 = vadd.f32 %v349, %v509
    %v511 = vpop.f32.mrf.mxu0
    %v512 = vadd.f32 %v351, %v511
    %513 = vdwg.mxu0
    %v514 = vmax.f32 %v420, %v422
    %515 = vmax.xlane.f32.xlu0 %v514
    %v516 = vpop.xlane.xlu0 %515
    %v517 = vmax.f32 %v426, %v428
    %518 = vmax.xlane.f32.xlu0 %v517
    %v519 = vpop.xlane.xlu0 %518
    %v520 = vmax.f32 %v432, %v434
    %521 = vmax.xlane.f32.xlu0 %v520
    %v522 = vpop.xlane.xlu0 %521
    %v523 = vmax.f32 %v438, %v440
    %524 = vmax.xlane.f32.xlu0 %v523
    %v525 = vpop.xlane.xlu0 %524
    %v526 = vmax.f32 %v444, %v446
    %527 = vmax.xlane.f32.xlu0 %v526
    %v528 = vpop.xlane.xlu0 %527
    %v529 = vmax.f32 %v450, %v452
    %530 = vmax.xlane.f32.xlu0 %v529
    %v531 = vpop.xlane.xlu0 %530
    %v532 = vmax.f32 %v456, %v458
    %533 = vmax.xlane.f32.xlu0 %v532
    %v534 = vpop.xlane.xlu0 %533
    %v535 = vmax.f32 %v462, %v464
    %536 = vmax.xlane.f32.xlu0 %v535
    %v537 = vpop.xlane.xlu0 %536
    %v538 = vmax.f32 %v468, %v470
    %539 = vmax.xlane.f32.xlu0 %v538
    %v540 = vpop.xlane.xlu0 %539
    %v541 = vmax.f32 %v474, %v476
    %542 = vmax.xlane.f32.xlu0 %v541
    %v543 = vpop.xlane.xlu0 %542
    %v544 = vmax.f32 %v480, %v482
    %545 = vmax.xlane.f32.xlu0 %v544
    %v546 = vpop.xlane.xlu0 %545
    %v547 = vmax.f32 %v486, %v488
    %548 = vmax.xlane.f32.xlu0 %v547
    %v549 = vpop.xlane.xlu0 %548
    %v550 = vmax.f32 %v492, %v494
    %551 = vmax.xlane.f32.xlu0 %v550
    %v552 = vpop.xlane.xlu0 %551
    %v553 = vmax.f32 %v498, %v500
    %554 = vmax.xlane.f32.xlu0 %v553
    %v555 = vpop.xlane.xlu0 %554
    %v556 = vmax.f32 %v504, %v506
    %557 = vmax.xlane.f32.xlu0 %v556
    %v558 = vpop.xlane.xlu0 %557
    %v559 = vmax.f32 %v510, %v512
    %560 = vmax.xlane.f32.xlu0 %v559
    %v561 = vpop.xlane.xlu0 %560
    %v562 = vsub.f32 %v420, %v516
    %v563 = vsub.f32 %v422, %v516
    %v564 = vsub.f32 %v426, %v519
    %v565 = vsub.f32 %v428, %v519
    %v566 = vsub.f32 %v432, %v522
    %v567 = vsub.f32 %v434, %v522
    %v568 = vsub.f32 %v438, %v525
    %v569 = vsub.f32 %v440, %v525
    %v570 = vsub.f32 %v444, %v528
    %v571 = vsub.f32 %v446, %v528
    %v572 = vsub.f32 %v450, %v531
    %v573 = vsub.f32 %v452, %v531
    %v574 = vsub.f32 %v456, %v534
    %v575 = vsub.f32 %v458, %v534
    %v576 = vsub.f32 %v462, %v537
    %v577 = vsub.f32 %v464, %v537
    %v578 = vsub.f32 %v468, %v540
    %v579 = vsub.f32 %v470, %v540
    %v580 = vsub.f32 %v474, %v543
    %v581 = vsub.f32 %v476, %v543
    %v582 = vsub.f32 %v480, %v546
    %v583 = vsub.f32 %v482, %v546
    %v584 = vsub.f32 %v486, %v549
    %v585 = vsub.f32 %v488, %v549
    %v586 = vsub.f32 %v492, %v552
    %v587 = vsub.f32 %v494, %v552
    %v588 = vsub.f32 %v498, %v555
    %v589 = vsub.f32 %v500, %v555
    %v590 = vsub.f32 %v504, %v558
    %v591 = vsub.f32 %v506, %v558
    %v592 = vsub.f32 %v510, %v561
    %v593 = vsub.f32 %v512, %v561
    %v594 = vmul.f32 %v562, 1.442695
    %v595 = vpow.pop %v594
    %v596 = vmul.f32 %v563, 1.442695
    %v597 = vpow.pop %v596
    %v598 = vmul.f32 %v564, 1.442695
    %v599 = vpow.pop %v598
    %v600 = vmul.f32 %v565, 1.442695
    %v601 = vpow.pop %v600
    %v602 = vmul.f32 %v566, 1.442695
    %v603 = vpow.pop %v602
    %v604 = vmul.f32 %v567, 1.442695
    %v605 = vpow.pop %v604
    %v606 = vmul.f32 %v568, 1.442695
    %v607 = vpow.pop %v606
    %v608 = vmul.f32 %v569, 1.442695
    %v609 = vpow.pop %v608
    %v610 = vmul.f32 %v570, 1.442695
    %v611 = vpow.pop %v610
    %v612 = vmul.f32 %v571, 1.442695
    %v613 = vpow.pop %v612
    %v614 = vmul.f32 %v572, 1.442695
    %v615 = vpow.pop %v614
    %v616 = vmul.f32 %v573, 1.442695
    %v617 = vpow.pop %v616
    %v618 = vmul.f32 %v574, 1.442695
    %v619 = vpow.pop %v618
    %v620 = vmul.f32 %v575, 1.442695
    %v621 = vpow.pop %v620
    %v622 = vmul.f32 %v576, 1.442695
    %v623 = vpow.pop %v622
    %v624 = vmul.f32 %v577, 1.442695
    %v625 = vpow.pop %v624
    %v626 = vmul.f32 %v578, 1.442695
    %v627 = vpow.pop %v626
    %v628 = vmul.f32 %v579, 1.442695
    %v629 = vpow.pop %v628
    %v630 = vmul.f32 %v580, 1.442695
    %v631 = vpow.pop %v630
    %v632 = vmul.f32 %v581, 1.442695
    %v633 = vpow.pop %v632
    %v634 = vmul.f32 %v582, 1.442695
    %v635 = vpow.pop %v634
    %v636 = vmul.f32 %v583, 1.442695
    %v637 = vpow.pop %v636
    %v638 = vmul.f32 %v584, 1.442695
    %v639 = vpow.pop %v638
    %v640 = vmul.f32 %v585, 1.442695
    %v641 = vpow.pop %v640
    %v642 = vmul.f32 %v586, 1.442695
    %v643 = vpow.pop %v642
    %v644 = vmul.f32 %v587, 1.442695
    %v645 = vpow.pop %v644
    %v646 = vmul.f32 %v588, 1.442695
    %v647 = vpow.pop %v646
    %v648 = vmul.f32 %v589, 1.442695
    %v649 = vpow.pop %v648
    %v650 = vmul.f32 %v590, 1.442695
    %v651 = vpow.pop %v650
    %v652 = vmul.f32 %v591, 1.442695
    %v653 = vpow.pop %v652
    %v654 = vmul.f32 %v592, 1.442695
    %v655 = vpow.pop %v654
    %v656 = vmul.f32 %v593, 1.442695
    %v657 = vpow.pop %v656
    %v658 = vadd.f32 %v595, %v597
    %659 = vadd.xlane.f32.xlu0 %v658
    %v660 = vpop.xlane.xlu0 %659
    %v661 = vadd.f32 %v599, %v601
    %662 = vadd.xlane.f32.xlu0 %v661
    %v663 = vpop.xlane.xlu0 %662
    %v664 = vadd.f32 %v603, %v605
    %665 = vadd.xlane.f32.xlu0 %v664
    %v666 = vpop.xlane.xlu0 %665
    %v667 = vadd.f32 %v607, %v609
    %668 = vadd.xlane.f32.xlu0 %v667
    %v669 = vpop.xlane.xlu0 %668
    %v670 = vadd.f32 %v611, %v613
    %671 = vadd.xlane.f32.xlu0 %v670
    %v672 = vpop.xlane.xlu0 %671
    %v673 = vadd.f32 %v615, %v617
    %674 = vadd.xlane.f32.xlu0 %v673
    %v675 = vpop.xlane.xlu0 %674
    %v676 = vadd.f32 %v619, %v621
    %677 = vadd.xlane.f32.xlu0 %v676
    %v678 = vpop.xlane.xlu0 %677
    %v679 = vadd.f32 %v623, %v625
    %680 = vadd.xlane.f32.xlu0 %v679
    %v681 = vpop.xlane.xlu0 %680
    %v682 = vadd.f32 %v627, %v629
    %683 = vadd.xlane.f32.xlu0 %v682
    %v684 = vpop.xlane.xlu0 %683
    %v685 = vadd.f32 %v631, %v633
    %686 = vadd.xlane.f32.xlu0 %v685
    %v687 = vpop.xlane.xlu0 %686
    %v688 = vadd.f32 %v635, %v637
    %689 = vadd.xlane.f32.xlu0 %v688
    %v690 = vpop.xlane.xlu0 %689
    %v691 = vadd.f32 %v639, %v641
    %692 = vadd.xlane.f32.xlu0 %v691
    %v693 = vpop.xlane.xlu0 %692
    %v694 = vadd.f32 %v643, %v645
    %695 = vadd.xlane.f32.xlu0 %v694
    %v696 = vpop.xlane.xlu0 %695
    %v697 = vadd.f32 %v647, %v649
    %698 = vadd.xlane.f32.xlu0 %v697
    %v699 = vpop.xlane.xlu0 %698
    %v700 = vadd.f32 %v651, %v653
    %701 = vadd.xlane.f32.xlu0 %v700
    %v702 = vpop.xlane.xlu0 %701
    %v703 = vadd.f32 %v655, %v657
    %704 = vadd.xlane.f32.xlu0 %v703
    %v705 = vpop.xlane.xlu0 %704
    %v706 = vrcp.pop %v660
    %v707 = vrcp.pop %v663
    %v708 = vrcp.pop %v666
    %v709 = vrcp.pop %v669
    %v710 = vrcp.pop %v672
    %v711 = vrcp.pop %v675
    %v712 = vrcp.pop %v678
    %v713 = vrcp.pop %v681
    %v714 = vrcp.pop %v684
    %v715 = vrcp.pop %v687
    %v716 = vrcp.pop %v690
    %v717 = vrcp.pop %v693
    %v718 = vrcp.pop %v696
    %v719 = vrcp.pop %v699
    %v720 = vrcp.pop %v702
    %v721 = vrcp.pop %v705
    %v722 = vmul.f32 %v595, %v706
    %v723 = vmul.f32 %v597, %v706
    %v724 = vmul.f32 %v599, %v707
    %v725 = vmul.f32 %v601, %v707
    %v726 = vmul.f32 %v603, %v708
    %v727 = vmul.f32 %v605, %v708
    %v728 = vmul.f32 %v607, %v709
    %v729 = vmul.f32 %v609, %v709
    %v730 = vmul.f32 %v611, %v710
    %v731 = vmul.f32 %v613, %v710
    %v732 = vmul.f32 %v615, %v711
    %v733 = vmul.f32 %v617, %v711
    %v734 = vmul.f32 %v619, %v712
    %v735 = vmul.f32 %v621, %v712
    %v736 = vmul.f32 %v623, %v713
    %v737 = vmul.f32 %v625, %v713
    %v738 = vmul.f32 %v627, %v714
    %v739 = vmul.f32 %v629, %v714
    %v740 = vmul.f32 %v631, %v715
    %v741 = vmul.f32 %v633, %v715
    %v742 = vmul.f32 %v635, %v716
    %v743 = vmul.f32 %v637, %v716
    %v744 = vmul.f32 %v639, %v717
    %v745 = vmul.f32 %v641, %v717
    %v746 = vmul.f32 %v643, %v718
    %v747 = vmul.f32 %v645, %v718
    %v748 = vmul.f32 %v647, %v719
    %v749 = vmul.f32 %v649, %v719
    %v750 = vmul.f32 %v651, %v720
    %v751 = vmul.f32 %v653, %v720
    %v752 = vmul.f32 %v655, %v721
    %v753 = vmul.f32 %v657, %v721
    %754 = vst [vmem:[#allocation2] sm:$0xff] %v722
    %755 = vst [vmem:[#allocation2 + $0x8] sm:$0xff] %v723
    %756 = vst [vmem:[#allocation2 + $0x10] sm:$0xff] %v724
    %757 = vst [vmem:[#allocation2 + $0x18] sm:$0xff] %v725
    %758 = vst [vmem:[#allocation2 + $0x20] sm:$0xff] %v726
    %759 = vst [vmem:[#allocation2 + $0x28] sm:$0xff] %v727
    %760 = vst [vmem:[#allocation2 + $0x30] sm:$0xff] %v728
    %761 = vst [vmem:[#allocation2 + $0x38] sm:$0xff] %v729
    %762 = vst [vmem:[#allocation2 + $0x40] sm:$0xff] %v730
    %763 = vst [vmem:[#allocation2 + $0x48] sm:$0xff] %v731
    %764 = vst [vmem:[#allocation2 + $0x50] sm:$0xff] %v732
    %765 = vst [vmem:[#allocation2 + $0x58] sm:$0xff] %v733
    %766 = vst [vmem:[#allocation2 + $0x60] sm:$0xff] %v734
    %767 = vst [vmem:[#allocation2 + $0x68] sm:$0xff] %v735
    %768 = vst [vmem:[#allocation2 + $0x70] sm:$0xff] %v736
    %769 = vst [vmem:[#allocation2 + $0x78] sm:$0xff] %v737
    %770 = vst [vmem:[#allocation2 + $0x80] sm:$0xff] %v738
    %771 = vst [vmem:[#allocation2 + $0x88] sm:$0xff] %v739
    %772 = vst [vmem:[#allocation2 + $0x90] sm:$0xff] %v740
    %773 = vst [vmem:[#allocation2 + $0x98] sm:$0xff] %v741
    %774 = vst [vmem:[#allocation2 + $0xa0] sm:$0xff] %v742
    %775 = vst [vmem:[#allocation2 + $0xa8] sm:$0xff] %v743
    %776 = vst [vmem:[#allocation2 + $0xb0] sm:$0xff] %v744
    %777 = vst [vmem:[#allocation2 + $0xb8] sm:$0xff] %v745
    %778 = vst [vmem:[#allocation2 + $0xc0] sm:$0xff] %v746
    %779 = vst [vmem:[#allocation2 + $0xc8] sm:$0xff] %v747
    %780 = vst [vmem:[#allocation2 + $0xd0] sm:$0xff] %v748
    %781 = vst [vmem:[#allocation2 + $0xd8] sm:$0xff] %v749
    %782 = vst [vmem:[#allocation2 + $0xe0] sm:$0xff] %v750
    %783 = vst [vmem:[#allocation2 + $0xe8] sm:$0xff] %v751
    %784 = vst [vmem:[#allocation2 + $0xf0] sm:$0xff] %v752
    %785 = vst [vmem:[#allocation2 + $0xf8] sm:$0xff] %v753
    // Predicated region
    $region10: #{tpu_custom_call.1} parent=1 // pred_check
      _
    $region11: #{tpu_custom_call.1} parent=1 // pred_check_branch
      %787 = sbr.rel (0) target = $region13
    $region12: #{tpu_custom_call.1} parent=1 // pred_region
      %s789 = ssub.s32 4096, 4096
      %790 = vsyncadd [#allocation3], %s789
      %s791 = sshll.u32 [#allocation2], 4
      %s792 = int_to_ptr.vmem [resolvable:$true] %s791
      %797 = dma.vmem_to_hbm [thread:$0]  %s792, 4096, %s2, [#allocation3], 256, 256, 16
    $region13: #{tpu_custom_call.1} parent=1 // pred_fallthru
      _
    // Predicated region
    $region14: #{tpu_custom_call.1} parent=1 // pred_check
      _
    $region15: #{tpu_custom_call.1} parent=1 // pred_check_branch
      %799 = sbr.rel (0) target = $region17
    $region16: #{tpu_custom_call.1} parent=1 // pred_region
      %800 = dma.done [#allocation3], 4096
    $region17: #{tpu_custom_call.1} parent=1 // pred_fallthru
      _
    %801 = vsyncpa [#allocation3], 1

</llo_original>
